<compile_context>
chip_gen: v7x
topology: tpu7x:2x2x1
jax: 0.10.0
libtpu: 0.0.40
codegen_flags: <defaults>
</compile_context>

<pallas_src>
import functools

import jax
import jax.numpy as jnp
from jax.experimental import pallas as pl
from jax.experimental.pallas import tpu as pltpu


# ---------------------------------------------------------------------------
# Kernel
# ---------------------------------------------------------------------------

def _conv_layer_kernel(bt, L, x_ref, w_ref, shift_ref, mask_ref, o_ref,
                       xstack_ref, pool_ref):
    """One grid step processes `bt` sequences of length L with C channels on lanes."""
    L2 = L + 2                       # Conv1d(k=3, padding=2, circular) output length
    L_out = (L2 - 1) // 2 + 1        # MaxPool1d(k=3, stride=2, padding=1) output length
    C = x_ref.shape[-1]
    S = xstack_ref.shape[1]          # per-sequence row stride (multiple of 16, >= L2+2)
    cdt = xstack_ref.dtype

    # ---- stage the K-stacked, circularly padded input (im2col), batched over bt ------
    # xstack[b, 1 + t, k*C:(k+1)*C] = xpad_b[t + k],  xpad_b = [x[L-2:], x, x[:2]]
    xall = x_ref[...].astype(cdt)                                       # (bt, L, C)
    xstack_ref[:, pl.ds(3, L), pl.ds(0, C)] = xall                      # tap 0 body
    xstack_ref[:, pl.ds(1, 2), pl.ds(0, C)] = xall[:, L - 2:L, :]       # tap 0 left wrap
    xstack_ref[:, pl.ds(2, L), pl.ds(C, C)] = xall                      # tap 1 body
    xstack_ref[:, pl.ds(1, 1), pl.ds(C, C)] = xall[:, L - 1:L, :]       # tap 1 left wrap
    xstack_ref[:, pl.ds(L + 2, 1), pl.ds(C, C)] = xall[:, 0:1, :]       # tap 1 right wrap
    xstack_ref[:, pl.ds(1, L), pl.ds(2 * C, C)] = xall                  # tap 2 body
    xstack_ref[:, pl.ds(L + 1, 2), pl.ds(2 * C, C)] = xall[:, 0:2, :]   # tap 2 right wrap
    # (per-seq rows 0 and [L2+1, S) are never staged; those conv rows are masked below)

    # ---- conv as one K-stacked MXU matmul (bf16 operands, f32 accumulation) ----------
    xflat = xstack_ref[...].reshape(bt * S, 3 * C)        # S % 16 == 0 -> free regroup
    y = jnp.dot(xflat, w_ref[...], preferred_element_type=jnp.float32)   # (bt*S, C) f32

    # ---- epilogue: + shift (conv bias + BN folded), ELU, pool-guard mask -------------
    a = y + shift_ref[...]
    a = jnp.where(a > 0.0, a, jnp.exp(jnp.minimum(a, 0.0)) - 1.0)        # ELU (alpha=1)
    # maxpool "-inf" padding / garbage-row guard (ELU output is always > -1)
    a = jnp.where(mask_ref[...] > 0.5, -1e30, a)
    pool_ref[pl.ds(0, bt * S), :] = a

    # ---- MaxPool1d(k=3, s=2, p=1), batched over all bt sequences ---------------------
    # pooled[b, t] = max(pool[b*S + 2t], pool[b*S + 2t + 1], pool[b*S + 2t + 2])
    n = bt * S // 2
    p0 = pool_ref[pl.ds(0, n, stride=2), :]
    p1 = pool_ref[pl.ds(1, n, stride=2), :]
    p2 = pool_ref[pl.ds(2, n, stride=2), :]
    pooled = jnp.maximum(jnp.maximum(p0, p1), p2).reshape(bt, S // 2, C)
    o_ref[...] = pooled[:, :L_out, :].astype(o_ref.dtype)


# ---------------------------------------------------------------------------
# Wrapper
# ---------------------------------------------------------------------------

def conv_layer_forward(x, w, conv_bias, gamma, beta, running_mean, running_var,
                       *, eps=1e-5, batch_tile=None, m_cap=2048,
                       compute_dtype=jnp.bfloat16):
    """x: (B, L, C); w: (3, C_in, C_out) tap-major (w[k, ci, co] == torch_weight[co, ci, k])."""
    B, L, C = x.shape
    assert L >= 2, "circular padding of 2 requires L >= 2"
    assert w.shape == (3, C, C)
    if C % 128 != 0:
        raise NotImplementedError("kernel assumes C is a multiple of 128 (lane-dense)")

    L2 = L + 2
    L_out = (L2 - 1) // 2 + 1
    S = ((L2 + 2) + 15) // 16 * 16          # per-sequence row stride: >= L2+2, 16-aligned

    if batch_tile is None:
        # largest divisor of B with M = bt*S <= m_cap, keeping >= 2 grid steps when
        # possible (both v7x TensorCores busy); fall back to grid == 1 only if needed.
        divisors = [d for d in range(1, B + 1) if B % d == 0]
        cands = [d for d in divisors if d * S <= m_cap and B // d >= 2]
        if not cands:
            cands = [d for d in divisors if d * S <= m_cap] or [1]
        batch_tile = max(cands)
    assert B % batch_tile == 0
    bt = batch_tile

    # Fold conv bias + eval-mode BatchNorm: scale goes into the weights (f32 multiply,
    # then bf16 cast); only a per-channel shift remains for the kernel epilogue.
    scale = (gamma / jnp.sqrt(running_var + eps)).astype(jnp.float32)               # (C,)
    shift = ((conv_bias - running_mean) * scale + beta).astype(jnp.float32).reshape(1, C)
    w_k = (w.astype(jnp.float32) * scale[None, None, :]).reshape(3 * C, C).astype(compute_dtype)

    # per-row maxpool guard mask: 1.0 on the left guard row and on rows >= L2+1.
    rmod = jnp.arange(bt * S) % S
    pad_mask = ((rmod == 0) | (rmod >= L2 + 1)).astype(jnp.float32).reshape(bt * S, 1)

    # Explicit VMEM budget (v7x has only 64 MiB physical VMEM).
    xb = jnp.dtype(x.dtype).itemsize
    cb = jnp.dtype(compute_dtype).itemsize
    vmem_est = (2 * bt * L * C * xb            # x tile, double-buffered
                + 2 * bt * L_out * C * xb      # out tile, double-buffered
                + 2 * 3 * C * C * cb           # K-stacked weights
                + bt * S * 3 * C * cb          # im2col scratch (bf16)
                + (bt * S + 8) * C * 4         # pool scratch (f32)
                + 3 * bt * S * C * 4)          # matmul/ELU temporaries headroom
    vmem_limit = int(min(64 * 1024 * 1024, max(32 * 1024 * 1024, 2 * vmem_est)))

    kernel = functools.partial(_conv_layer_kernel, bt, L)
    return pl.pallas_call(
        kernel,
        out_shape=jax.ShapeDtypeStruct((B, L_out, C), x.dtype),
        grid=(B // bt,),
        in_specs=[
            pl.BlockSpec((bt, L, C), lambda i: (i, 0, 0)),     # x tile
            pl.BlockSpec((3 * C, C), lambda i: (0, 0)),         # K-stacked scaled weights
            pl.BlockSpec((1, C), lambda i: (0, 0)),             # fused shift
            pl.BlockSpec((bt * S, 1), lambda i: (0, 0)),        # maxpool guard mask
        ],
        out_specs=pl.BlockSpec((bt, L_out, C), lambda i: (i, 0, 0)),
        scratch_shapes=[
            pltpu.VMEM((bt, S, 3 * C), compute_dtype),   # im2col / K-stacked input (bf16)
            pltpu.VMEM((bt * S + 8, C), jnp.float32),    # guarded activations for maxpool
        ],
        compiler_params=pltpu.CompilerParams(
            dimension_semantics=("parallel",),
            vmem_limit_bytes=vmem_limit),
    )(x, w_k, shift, pad_mask)


# ---------------------------------------------------------------------------
# Pure-JAX reference (mirrors the PyTorch module in eval mode)
# ---------------------------------------------------------------------------

def _conv_layer_reference(x, w, conv_bias, gamma, beta, running_mean, running_var, eps=1e-5):
    B, L, C = x.shape
    xp = jnp.concatenate([x[:, L - 2:, :], x, x[:, :2, :]], axis=1)   # circular pad (2, 2)
    L2 = L + 2
    conv = sum(jnp.einsum("btc,cd->btd", xp[:, k:k + L2, :], w[k]) for k in range(3)) + conv_bias
    a = (conv - running_mean) / jnp.sqrt(running_var + eps) * gamma + beta
    a = jnp.where(a > 0, a, jnp.exp(a) - 1.0)                         # ELU
    L_out = (L2 - 1) // 2 + 1
    ap = jnp.pad(a, ((0, 0), (1, 1), (0, 0)), constant_values=-jnp.inf)
    return jnp.stack([jnp.max(ap[:, 2 * t:2 * t + 3, :], axis=1) for t in range(L_out)], axis=1)


# ---------------------------------------------------------------------------

if __name__ == "__main__":
    B, L, C = 4, 32, 128          # small, but lane-dense: C rides the 128-lane axis

    key = jax.random.PRNGKey(0)
    k_x, k_w, k_b, k_g, k_be, k_m, k_v = jax.random.split(key, 7)
    x = jax.random.normal(k_x, (B, L, C), jnp.float32)
    w = jax.random.normal(k_w, (3, C, C), jnp.float32) * 0.05          # (tap, c_in, c_out)
    conv_bias = jax.random.normal(k_b, (C,), jnp.float32) * 0.1
    gamma = 1.0 + 0.1 * jax.random.normal(k_g, (C,), jnp.float32)
    beta = 0.1 * jax.random.normal(k_be, (C,), jnp.float32)
    running_mean = 0.1 * jax.random.normal(k_m, (C,), jnp.float32)
    running_var = 1.0 + 0.1 * jax.random.uniform(k_v, (C,), jnp.float32)

    L_out = (L + 2 - 1) // 2 + 1

    # f32 I/O path
    out = conv_layer_forward(x, w, conv_bias, gamma, beta, running_mean, running_var)
    jax.block_until_ready(out)
    assert out.shape == (B, L_out, C), out.shape
    ref = _conv_layer_reference(x, w, conv_bias, gamma, beta, running_mean, running_var)
    err = float(jnp.max(jnp.abs(out.astype(jnp.float32) - ref)))
    assert err < 5e-2, f"f32 path: max abs error {err}"   # bf16 MXU operands, f32 accumulation

    # bf16 I/O path (kernel is HBM-bound, so bf16 I/O is the biggest lever); math stays f32.
    x16 = x.astype(jnp.bfloat16)
    out16 = conv_layer_forward(x16, w, conv_bias, gamma, beta, running_mean, running_var)
    jax.block_until_ready(out16)
    assert out16.shape == (B, L_out, C) and out16.dtype == jnp.bfloat16
    ref16 = _conv_layer_reference(x16.astype(jnp.float32), w, conv_bias, gamma, beta,
                                  running_mean, running_var)
    err16 = float(jnp.max(jnp.abs(out16.astype(jnp.float32) - ref16)))
    assert err16 < 2e-1, f"bf16 path: max abs error {err16}"

    print("KERNEL_OK")
</pallas_src>

<mosaic_0001>
module attributes {stable_mosaic.version = 11 : i64} {
  func.func @_conv_layer_kernel(%arg0: i32, %arg1: memref<2x32x128xf32, #tpu.memory_space<vmem>>, %arg2: memref<384x128xbf16, #tpu.memory_space<vmem>>, %arg3: memref<1x128xf32, #tpu.memory_space<vmem>>, %arg4: memref<96x1xf32, #tpu.memory_space<vmem>>, %arg5: memref<2x17x128xf32, #tpu.memory_space<vmem>>, %arg6: memref<2x48x384xbf16, #tpu.memory_space<vmem>>, %arg7: memref<104x128xf32, #tpu.memory_space<vmem>>) attributes {dimension_semantics = [#tpu.dimension_semantics<parallel>], iteration_bounds = array<i64: 2>, scalar_prefetch = 0 : i64, scratch_operands = 2 : i64, tpu.core_type = #tpu.core_type<tc>, window_params = [{transform_indices = @transform_0, window_bounds = array<i64: 2, 32, 128>}, {pipeline_mode = #tpu.pipeline_mode<synchronous>, transform_indices = @transform_1, window_bounds = array<i64: 384, 128>}, {pipeline_mode = #tpu.pipeline_mode<synchronous>, transform_indices = @transform_2, window_bounds = array<i64: 1, 128>}, {pipeline_mode = #tpu.pipeline_mode<synchronous>, transform_indices = @transform_3, window_bounds = array<i64: 96, 1>}, {transform_indices = @transform_4, window_bounds = array<i64: 2, 17, 128>}]} {
    %c0 = arith.constant 0 : index
    %c0_0 = arith.constant 0 : index
    %c0_1 = arith.constant 0 : index
    %0 = vector.load %arg1[%c0, %c0_0, %c0_1] : memref<2x32x128xf32, #tpu.memory_space<vmem>>, vector<2x32x128xf32>
    %1 = arith.truncf %0 : vector<2x32x128xf32> to vector<2x32x128xbf16>
    %c0_2 = arith.constant 0 : index
    %c3 = arith.constant 3 : index
    %c0_3 = arith.constant 0 : index
    %2 = vector.load %arg6[%c0_2, %c3, %c0_3] : memref<2x48x384xbf16, #tpu.memory_space<vmem>>, vector<2x32x128xbf16>
    tpu.vector_store %arg6[%c0_2, %c3, %c0_3], %1 {strides = array<i32>} : memref<2x48x384xbf16, #tpu.memory_space<vmem>>, vector<2x32x128xbf16>,
    %3 = vector.extract_strided_slice %1 {offsets = [0, 30, 0], sizes = [2, 2, 128], strides = [1, 1, 1]} : vector<2x32x128xbf16> to vector<2x2x128xbf16>
    %c0_4 = arith.constant 0 : index
    %c1 = arith.constant 1 : index
    %c0_5 = arith.constant 0 : index
    %4 = vector.load %arg6[%c0_4, %c1, %c0_5] : memref<2x48x384xbf16, #tpu.memory_space<vmem>>, vector<2x2x128xbf16>
    tpu.vector_store %arg6[%c0_4, %c1, %c0_5], %3 {strides = array<i32>} : memref<2x48x384xbf16, #tpu.memory_space<vmem>>, vector<2x2x128xbf16>,
    %c0_6 = arith.constant 0 : index
    %c2 = arith.constant 2 : index
    %c128 = arith.constant 128 : index
    %5 = vector.load %arg6[%c0_6, %c2, %c128] : memref<2x48x384xbf16, #tpu.memory_space<vmem>>, vector<2x32x128xbf16>
    tpu.vector_store %arg6[%c0_6, %c2, %c128], %1 {strides = array<i32>} : memref<2x48x384xbf16, #tpu.memory_space<vmem>>, vector<2x32x128xbf16>,
    %6 = vector.extract_strided_slice %1 {offsets = [0, 31, 0], sizes = [2, 1, 128], strides = [1, 1, 1]} : vector<2x32x128xbf16> to vector<2x1x128xbf16>
    %c0_7 = arith.constant 0 : index
    %c1_8 = arith.constant 1 : index
    %c128_9 = arith.constant 128 : index
    %7 = vector.load %arg6[%c0_7, %c1_8, %c128_9] : memref<2x48x384xbf16, #tpu.memory_space<vmem>>, vector<2x1x128xbf16>
    tpu.vector_store %arg6[%c0_7, %c1_8, %c128_9], %6 {strides = array<i32>} : memref<2x48x384xbf16, #tpu.memory_space<vmem>>, vector<2x1x128xbf16>,
    %8 = vector.extract_strided_slice %1 {offsets = [0, 0, 0], sizes = [2, 1, 128], strides = [1, 1, 1]} : vector<2x32x128xbf16> to vector<2x1x128xbf16>
    %c0_10 = arith.constant 0 : index
    %c34 = arith.constant 34 : index
    %c128_11 = arith.constant 128 : index
    %9 = vector.load %arg6[%c0_10, %c34, %c128_11] : memref<2x48x384xbf16, #tpu.memory_space<vmem>>, vector<2x1x128xbf16>
    tpu.vector_store %arg6[%c0_10, %c34, %c128_11], %8 {strides = array<i32>} : memref<2x48x384xbf16, #tpu.memory_space<vmem>>, vector<2x1x128xbf16>,
    %c0_12 = arith.constant 0 : index
    %c1_13 = arith.constant 1 : index
    %c256 = arith.constant 256 : index
    %10 = vector.load %arg6[%c0_12, %c1_13, %c256] : memref<2x48x384xbf16, #tpu.memory_space<vmem>>, vector<2x32x128xbf16>
    tpu.vector_store %arg6[%c0_12, %c1_13, %c256], %1 {strides = array<i32>} : memref<2x48x384xbf16, #tpu.memory_space<vmem>>, vector<2x32x128xbf16>,
    %11 = vector.extract_strided_slice %1 {offsets = [0, 0, 0], sizes = [2, 2, 128], strides = [1, 1, 1]} : vector<2x32x128xbf16> to vector<2x2x128xbf16>
    %c0_14 = arith.constant 0 : index
    %c33 = arith.constant 33 : index
    %c256_15 = arith.constant 256 : index
    %12 = vector.load %arg6[%c0_14, %c33, %c256_15] : memref<2x48x384xbf16, #tpu.memory_space<vmem>>, vector<2x2x128xbf16>
    tpu.vector_store %arg6[%c0_14, %c33, %c256_15], %11 {strides = array<i32>} : memref<2x48x384xbf16, #tpu.memory_space<vmem>>, vector<2x2x128xbf16>,
    %c0_16 = arith.constant 0 : index
    %c0_17 = arith.constant 0 : index
    %c0_18 = arith.constant 0 : index
    %13 = vector.load %arg6[%c0_16, %c0_17, %c0_18] : memref<2x48x384xbf16, #tpu.memory_space<vmem>>, vector<2x48x384xbf16>
    %14 = vector.shape_cast %13 : vector<2x48x384xbf16> to vector<96x384xbf16>
    %c0_19 = arith.constant 0 : index
    %c0_20 = arith.constant 0 : index
    %15 = vector.load %arg2[%c0_19, %c0_20] : memref<384x128xbf16, #tpu.memory_space<vmem>>, vector<384x128xbf16>
    %cst = arith.constant dense<0.000000e+00> : vector<96x128xf32>
    %16 = tpu.matmul %14, %15, %cst {dimension_numbers = #tpu.dot_dimension_numbers<[1], [0], [0], [1], [0, 0, 1, 1], [], []>} : vector<96x384xbf16>, vector<384x128xbf16>, vector<96x128xf32> -> vector<96x128xf32>
    %c0_21 = arith.constant 0 : index
    %c0_22 = arith.constant 0 : index
    %17 = vector.load %arg3[%c0_21, %c0_22] : memref<1x128xf32, #tpu.memory_space<vmem>>, vector<1x128xf32>
    %18 = vector.broadcast %17 : vector<1x128xf32> to vector<96x128xf32>
    %19 = arith.addf %16, %18 : vector<96x128xf32>
    %cst_23 = arith.constant 0.000000e+00 : f32
    %20 = vector.broadcast %cst_23 : f32 to vector<96x128xf32>
    %21 = arith.cmpf ogt, %19, %20 : vector<96x128xf32>
    %cst_24 = arith.constant 0.000000e+00 : f32
    %22 = vector.broadcast %cst_24 : f32 to vector<96x128xf32>
    %23 = arith.minimumf %19, %22 : vector<96x128xf32>
    %24 = math.exp %23 : vector<96x128xf32>
    %cst_25 = arith.constant 1.000000e+00 : f32
    %25 = vector.broadcast %cst_25 : f32 to vector<96x128xf32>
    %26 = arith.subf %24, %25 : vector<96x128xf32>
    %27 = arith.select %21, %19, %26 : vector<96x128xi1>, vector<96x128xf32>
    %c0_26 = arith.constant 0 : index
    %c0_27 = arith.constant 0 : index
    %28 = vector.load %arg4[%c0_26, %c0_27] : memref<96x1xf32, #tpu.memory_space<vmem>>, vector<96x1xf32>
    %cst_28 = arith.constant 5.000000e-01 : f32
    %29 = vector.broadcast %cst_28 : f32 to vector<96x1xf32>
    %30 = arith.cmpf ogt, %28, %29 : vector<96x1xf32>
    %cst_29 = arith.constant -1.000000e+30 : f32
    %31 = vector.shape_cast %30 : vector<96x1xi1> to vector<96x1xi1>
    %32 = vector.broadcast %31 : vector<96x1xi1> to vector<96x128xi1>
    %33 = vector.broadcast %cst_29 : f32 to vector<96x128xf32>
    %34 = arith.select %32, %33, %27 : vector<96x128xi1>, vector<96x128xf32>
    %c0_30 = arith.constant 0 : index
    %c0_31 = arith.constant 0 : index
    %35 = vector.load %arg7[%c0_30, %c0_31] : memref<104x128xf32, #tpu.memory_space<vmem>>, vector<96x128xf32>
    tpu.vector_store %arg7[%c0_30, %c0_31], %34 {strides = array<i32>} : memref<104x128xf32, #tpu.memory_space<vmem>>, vector<96x128xf32>,
    %c0_32 = arith.constant 0 : index
    %c0_33 = arith.constant 0 : index
    %36 = tpu.strided_load %arg7[%c0_32, %c0_33] {strides = array<i32: 2, 1>} : memref<104x128xf32, #tpu.memory_space<vmem>>, vector<48x128xf32>
    %c1_34 = arith.constant 1 : index
    %c0_35 = arith.constant 0 : index
    %37 = tpu.strided_load %arg7[%c1_34, %c0_35] {strides = array<i32: 2, 1>} : memref<104x128xf32, #tpu.memory_space<vmem>>, vector<48x128xf32>
    %c2_36 = arith.constant 2 : index
    %c0_37 = arith.constant 0 : index
    %38 = tpu.strided_load %arg7[%c2_36, %c0_37] {strides = array<i32: 2, 1>} : memref<104x128xf32, #tpu.memory_space<vmem>>, vector<48x128xf32>
    %39 = arith.maximumf %36, %37 : vector<48x128xf32>
    %40 = arith.maximumf %39, %38 : vector<48x128xf32>
    %41 = vector.shape_cast %40 : vector<48x128xf32> to vector<2x24x128xf32>
    %42 = vector.extract_strided_slice %41 {offsets = [0, 0, 0], sizes = [2, 17, 128], strides = [1, 1, 1]} : vector<2x24x128xf32> to vector<2x17x128xf32>
    %c0_38 = arith.constant 0 : index
    %c0_39 = arith.constant 0 : index
    %c0_40 = arith.constant 0 : index
    %43 = vector.load %arg5[%c0_38, %c0_39, %c0_40] : memref<2x17x128xf32, #tpu.memory_space<vmem>>, vector<2x17x128xf32>
    tpu.vector_store %arg5[%c0_38, %c0_39, %c0_40], %42 {strides = array<i32>} : memref<2x17x128xf32, #tpu.memory_space<vmem>>, vector<2x17x128xf32>,
    return
  }
  func.func @transform_0(%arg0: i32) -> (i32, i32, i32) {
    %c0_i32 = arith.constant 0 : i32
    %c0_i32_0 = arith.constant 0 : i32
    %c0_i32_1 = arith.constant 0 : i32
    return %arg0, %c0_i32, %c0_i32_0 : i32, i32, i32
  }
  func.func @transform_1(%arg0: i32) -> (i32, i32) {
    %c0_i32 = arith.constant 0 : i32
    %c0_i32_0 = arith.constant 0 : i32
    %c0_i32_1 = arith.constant 0 : i32
    return %c0_i32, %c0_i32_0 : i32, i32
  }
  func.func @transform_2(%arg0: i32) -> (i32, i32) {
    %c0_i32 = arith.constant 0 : i32
    %c0_i32_0 = arith.constant 0 : i32
    %c0_i32_1 = arith.constant 0 : i32
    return %c0_i32, %c0_i32_0 : i32, i32
  }
  func.func @transform_3(%arg0: i32) -> (i32, i32) {
    %c0_i32 = arith.constant 0 : i32
    %c0_i32_0 = arith.constant 0 : i32
    %c0_i32_1 = arith.constant 0 : i32
    return %c0_i32, %c0_i32_0 : i32, i32
  }
  func.func @transform_4(%arg0: i32) -> (i32, i32, i32) {
    %c0_i32 = arith.constant 0 : i32
    %c0_i32_0 = arith.constant 0 : i32
    %c0_i32_1 = arith.constant 0 : i32
    return %arg0, %c0_i32, %c0_i32_0 : i32, i32, i32
  }
}

</mosaic_0001>

<llo_original>
// kernel: tpu_custom_call.1
$region0: #{tpu_custom_call.1}
  #allocation0 [shape = 'u32[]', space=smem, size = 0x4, offset = 0x4, fixed_abs, tag = 'smem constant byte address 0x4 - core index']
  #allocation1 [shape = 'u32[144,128]{1,0:T(1,128)}', space=vmem, size = 0x12000, scoped, tag = 'internal scratch']
  #allocation2 [shape = 'bf16[2,48,384]{2,1,0:T(16,128)(2,1)}', space=vmem, size = 0x12000, scoped, tag = 'scratch operand']
  #allocation3 [shape = 'f32[104,128]{1,0:T(8,128)}', space=vmem, size = 0xd000, scoped, tag = 'scratch operand']
  %s0 = inlined_call_operand.hbm [shape: f32[4,32,128], index: 0, kind: input, shape index: {}]
  %s1 = inlined_call_operand.hbm [shape: bf16[384,128], index: 1, kind: input, shape index: {}]
  %s2 = inlined_call_operand.vmem [shape: f32[1,128], index: 2, kind: input, shape index: {}]
  %s3 = inlined_call_operand.vmem [shape: f32[96,1], index: 3, kind: input, shape index: {}]
  %s4 = inlined_call_operand.vmem [shape: f32[4,17,128], index: 4, kind: output, shape index: {}]
  %s5 = sld [smem:[#allocation0]]
  $region57: #{tpu_custom_call.1} parent=0
    _
  %s7 = ssub.s32 1, %s5
  %s8 = scalar_select 0, %s7, %s5
  $region1: #{tpu_custom_call.1} parent=0
    #allocation4 [shape = 'u8[65536]{0}', space=vmem, size = 0x10000, scoped, tag = 'input window, operand 0']
    #allocation5 [shape = 's32[2]{0}', space=sflag, size = 0x8, scoped, tag = 'scoped memory for tpu_custom_call.1']
    #allocation6 [shape = 'u8[98304]{0}', space=vmem, size = 0x18000, scoped, tag = 'input window, operand 1, single buffered']
    #allocation7 [shape = 's32[1]{0}', space=sflag, size = 0x4, scoped, tag = 'scoped memory for tpu_custom_call.1']
    %9 = vsyncpa [#allocation5], 0
    %s10 = scalar_lea.sflag [#allocation5], 1
    %11 = vsyncpa %s10, 0
    %12 = vsyncpa [#allocation7], 0
    loop: start=0, step=1, limit=4
    $region2: #{tpu_custom_call.1} parent=1 // loop_pre_header
      _
    $region3: #{tpu_custom_call.1} parent=1 // loop_header
      %s14 = sphi 0, %s18
      %p15 = scmp.ge.s32.totalorder %s14, 4
      %s24 = sphi 0, %s26
      %s27 = sphi 0, %s24
      %s28 = sphi 0, %s27
      %s44 = sphi 0, %s28
      %s48 = sphi 0, %s48
      %s50 = sphi 0, %s48
      %s51 = sphi 0, %s50
      %s65 = sphi 0, %s51
      %s69 = sphi 0, %s69
      %s71 = sphi 0, %s69
      %s72 = sphi 0, %s71
      %s86 = sphi 0, %s72
      %s90 = sphi 0, %s90
      %s92 = sphi 0, %s90
      %s93 = sphi 0, %s92
      %s107 = sphi 0, %s93
      %s113 = sphi 0, %s115
      %s116 = sphi 0, %s113
      %s117 = sphi 0, %s116
      %s133 = sphi 0, %s117
    $region4: #{tpu_custom_call.1} parent=1 // loop_header_branch
      %17 = sbr.rel (%p15) target = $region8
    $region5: #{tpu_custom_call.1} parent=1 // loop_body
      %s19 = ssub.s32 %s14, 1
      %s20 = ssub.s32 %s14, 2
      %s21 = sadd.s32 %s14, 1
      %s22 = ssub.s32 %s14, %s21
      %p23 = scmp.eq.s32.totalorder %s22, 0
      %s25 = sadd.s32 %s24, 1
      %s26 = scalar_select %p23, %s24, %s25
      %p29 = pneg %p23
      %p30 = scmp.eq.s32.totalorder %s14, 1
      %p31 = por %p29, %p30
      %p32 = scmp.ne.s32.totalorder %s24, %s27
      %p33 = scmp.eq.s32.totalorder %s14, 0
      %p34 = por %p32, %p33
      %p35 = scmp.ne.s32.totalorder %s24, %s27
      %p36 = scmp.eq.s32.totalorder %s19, 1
      %p37 = por %p35, %p36
      %p38 = scmp.ne.s32.totalorder %s27, %s28
      %p39 = scmp.eq.s32.totalorder %s19, 0
      %p40 = por %p38, %p39
      %p41 = scmp.ne.s32.totalorder %s27, %s28
      %p42 = scmp.eq.s32.totalorder %s20, 1
      %p43 = por %p41, %p42
      %p45 = scmp.ne.s32.totalorder %s28, %s44
      %p46 = scmp.eq.s32.totalorder %s20, 0
      %p47 = por %p45, %p46
      %s49 = sadd.s32 %s48, 1
      %p52 = scmp.eq.s32.totalorder %s14, 1
      %p53 = scmp.ne.s32.totalorder %s48, %s50
      %p54 = scmp.eq.s32.totalorder %s14, 0
      %p55 = por %p53, %p54
      %p56 = scmp.ne.s32.totalorder %s48, %s50
      %p57 = scmp.eq.s32.totalorder %s19, 1
      %p58 = por %p56, %p57
      %p59 = scmp.ne.s32.totalorder %s50, %s51
      %p60 = scmp.eq.s32.totalorder %s19, 0
      %p61 = por %p59, %p60
      %p62 = scmp.ne.s32.totalorder %s50, %s51
      %p63 = scmp.eq.s32.totalorder %s20, 1
      %p64 = por %p62, %p63
      %p66 = scmp.ne.s32.totalorder %s51, %s65
      %p67 = scmp.eq.s32.totalorder %s20, 0
      %p68 = por %p66, %p67
      %s70 = sadd.s32 %s69, 1
      %p73 = scmp.eq.s32.totalorder %s14, 1
      %p74 = scmp.ne.s32.totalorder %s69, %s71
      %p75 = scmp.eq.s32.totalorder %s14, 0
      %p76 = por %p74, %p75
      %p77 = scmp.ne.s32.totalorder %s69, %s71
      %p78 = scmp.eq.s32.totalorder %s19, 1
      %p79 = por %p77, %p78
      %p80 = scmp.ne.s32.totalorder %s71, %s72
      %p81 = scmp.eq.s32.totalorder %s19, 0
      %p82 = por %p80, %p81
      %p83 = scmp.ne.s32.totalorder %s71, %s72
      %p84 = scmp.eq.s32.totalorder %s20, 1
      %p85 = por %p83, %p84
      %p87 = scmp.ne.s32.totalorder %s72, %s86
      %p88 = scmp.eq.s32.totalorder %s20, 0
      %p89 = por %p87, %p88
      %s91 = sadd.s32 %s90, 1
      %p94 = scmp.eq.s32.totalorder %s14, 1
      %p95 = scmp.ne.s32.totalorder %s90, %s92
      %p96 = scmp.eq.s32.totalorder %s14, 0
      %p97 = por %p95, %p96
      %p98 = scmp.ne.s32.totalorder %s90, %s92
      %p99 = scmp.eq.s32.totalorder %s19, 1
      %p100 = por %p98, %p99
      %p101 = scmp.ne.s32.totalorder %s92, %s93
      %p102 = scmp.eq.s32.totalorder %s19, 0
      %p103 = por %p101, %p102
      %p104 = scmp.ne.s32.totalorder %s92, %s93
      %p105 = scmp.eq.s32.totalorder %s20, 1
      %p106 = por %p104, %p105
      %p108 = scmp.ne.s32.totalorder %s93, %s107
      %p109 = scmp.eq.s32.totalorder %s20, 0
      %p110 = por %p108, %p109
      %s111 = ssub.s32 %s14, %s21
      %p112 = scmp.eq.s32.totalorder %s111, 0
      %s114 = sadd.s32 %s113, 1
      %s115 = scalar_select %p112, %s113, %s114
      %p118 = pneg %p112
      %p119 = scmp.eq.s32.totalorder %s14, 1
      %p120 = por %p118, %p119
      %p121 = scmp.ne.s32.totalorder %s113, %s116
      %p122 = scmp.eq.s32.totalorder %s14, 0
      %p123 = por %p121, %p122
      %p124 = scmp.ne.s32.totalorder %s113, %s116
      %p125 = scmp.eq.s32.totalorder %s19, 1
      %p126 = por %p124, %p125
      %p127 = scmp.ne.s32.totalorder %s116, %s117
      %p128 = scmp.eq.s32.totalorder %s19, 0
      %p129 = por %p127, %p128
      %p130 = scmp.ne.s32.totalorder %s116, %s117
      %p131 = scmp.eq.s32.totalorder %s20, 1
      %p132 = por %p130, %p131
      %p134 = scmp.ne.s32.totalorder %s117, %s133
      %p135 = scmp.eq.s32.totalorder %s20, 0
      %p136 = por %p134, %p135
      %p137 = scmp.le.s32.totalorder 1, %s14
      %p138 = scmp.lt.s32.totalorder %s14, 3
      %p139 = pnand %p137, %p138
      %p140 = pneg %p139
      // Predicated region
      $region9: #{tpu_custom_call.1} parent=5 // pred_check
        _
      $region10: #{tpu_custom_call.1} parent=5 // pred_check_branch
        %142 = sbr.rel (%p139) target = $region12
      $region11: #{tpu_custom_call.1} parent=5 // pred_region
        %s143 = ssub.s32 %s14, 1
        // Predicated region
        $region13: #{tpu_custom_call.1} parent=11 // pred_check
          %p144 = pneg %p61
        $region14: #{tpu_custom_call.1} parent=11 // pred_check_branch
          %146 = sbr.rel (%p144) target = $region16
        $region15: #{tpu_custom_call.1} parent=11 // pred_region
          %s148 = ssub.s32 3072, 3072
          %149 = vsyncadd [#allocation7], %s148
          %s150 = sshll.u32 [#allocation6], 4
          %s151 = int_to_ptr.vmem [resolvable:$true] %s150
          %156 = dma.hbm_to_vmem [thread:$0]  %s1, 3072, %s151, [#allocation7], 64, 64, 4
        $region16: #{tpu_custom_call.1} parent=11 // pred_fallthru
          _
        // Predicated region
        $region17: #{tpu_custom_call.1} parent=11 // pred_check
          %p157 = pneg %p82
        $region18: #{tpu_custom_call.1} parent=11 // pred_check_branch
          %159 = sbr.rel (%p157) target = $region20
        $region19: #{tpu_custom_call.1} parent=11 // pred_region
          _
        $region20: #{tpu_custom_call.1} parent=11 // pred_fallthru
          _
        // Predicated region
        $region21: #{tpu_custom_call.1} parent=11 // pred_check
          %p160 = pneg %p103
        $region22: #{tpu_custom_call.1} parent=11 // pred_check_branch
          %162 = sbr.rel (%p160) target = $region24
        $region23: #{tpu_custom_call.1} parent=11 // pred_region
          _
        $region24: #{tpu_custom_call.1} parent=11 // pred_fallthru
          _
      $region12: #{tpu_custom_call.1} parent=5 // pred_fallthru
        _
      %p163 = scmp.lt.s32.totalorder %s14, 2
      // Predicated region
      $region25: #{tpu_custom_call.1} parent=5 // pred_check
        %p164 = pneg %p163
      $region26: #{tpu_custom_call.1} parent=5 // pred_check_branch
        %166 = sbr.rel (%p164) target = $region28
      $region27: #{tpu_custom_call.1} parent=5 // pred_region
        // Predicated region
        $region29: #{tpu_custom_call.1} parent=27 // pred_check
          %p167 = pneg %p34
        $region30: #{tpu_custom_call.1} parent=27 // pred_check_branch
          %169 = sbr.rel (%p167) target = $region32
        $region31: #{tpu_custom_call.1} parent=27 // pred_region
          %s170 = sand.u32 %s24, 1
          %s171 = scalar_lea.sflag [#allocation5], %s170
          %s172 = sand.u32 %s24, 1
          %s173 = smul.addr %s172, 64
          %s174 = scalar_lea.vmem [#allocation4], %s173
          %s175 = smul.u32 2, %s14
          %s177 = ssub.s32 1024, 1024
          %178 = vsyncadd %s171, %s177
          %s179 = smul.addr %s175, 4
          %s180 = smul.addr %s179, 128
          %s181 = scalar_lea.hbm %s0, %s180
          %s182 = sshll.u32 %s174, 4
          %s183 = int_to_ptr.vmem [resolvable:$true] %s182
          %188 = dma.hbm_to_vmem [thread:$0]  %s181, 1024, %s183, %s171, 128, 128, 8
        $region32: #{tpu_custom_call.1} parent=27 // pred_fallthru
          _
      $region28: #{tpu_custom_call.1} parent=5 // pred_fallthru
        _
      %p189 = scmp.le.s32.totalorder 1, %s14
      %p190 = scmp.lt.s32.totalorder %s14, 3
      %p191 = pnand %p189, %p190
      %p192 = pneg %p191
      // Predicated region
      $region33: #{tpu_custom_call.1} parent=5 // pred_check
        _
      $region34: #{tpu_custom_call.1} parent=5 // pred_check_branch
        %194 = sbr.rel (%p191) target = $region36
      $region35: #{tpu_custom_call.1} parent=5 // pred_region
        %s195 = ssub.s32 %s14, 1
        %s196 = sand.u32 %s27, 1
        %s197 = scalar_lea.sflag [#allocation5], %s196
        %s198 = sand.u32 %s27, 1
        %s199 = smul.addr %s198, 64
        %s200 = scalar_lea.vmem [#allocation4], %s199
        // Predicated region
        $region37: #{tpu_custom_call.1} parent=35 // pred_check
          %p201 = pneg %p40
        $region38: #{tpu_custom_call.1} parent=35 // pred_check_branch
          %203 = sbr.rel (%p201) target = $region40
        $region39: #{tpu_custom_call.1} parent=35 // pred_region
          %204 = dma.done %s197, 1024
        $region40: #{tpu_custom_call.1} parent=35 // pred_fallthru
          _
        // Predicated region
        $region41: #{tpu_custom_call.1} parent=35 // pred_check
          %p205 = pneg %p61
        $region42: #{tpu_custom_call.1} parent=35 // pred_check_branch
          %207 = sbr.rel (%p205) target = $region44
        $region43: #{tpu_custom_call.1} parent=35 // pred_region
          %208 = dma.done [#allocation7], 3072
        $region44: #{tpu_custom_call.1} parent=35 // pred_fallthru
          _
        %s209 = sand.u32 %s27, 1
        %s210 = scalar_lea.sflag [#allocation5], %s209
        %s211 = sand.u32 %s27, 1
        %s212 = smul.addr %s211, 64
        %s213 = scalar_lea.vmem [#allocation4], %s212
        %p214 = pneg %p40
        %p215 = pneg %p37
        %p216 = pneg %p61
        %p217 = pneg %p58
        %p218 = pneg %p82
        %p219 = pneg %p79
        %p220 = pneg %p103
        %p221 = pneg %p100
        %p222 = pneg %p129
        %p223 = pneg %p126
        %s224 = smul.u32 2, %s19
        %p225 = scmp.lt.s32.totalorder %s224, 3
        %s226 = scalar_select %p225, %s224, 3
        %s227 = smul.addr %s226, 3
        %s228 = smul.addr %s227, 8
        %s229 = scalar_lea.vmem %s4, %s228
        %s230 = smul.u32 2, %s19
        %s231 = smul.u32 2, %s19
        %p232 = scmp.lt.s32.totalorder %s231, 3
        %s233 = scalar_select %p232, %s231, 3
        %s234 = smul.addr %s233, 3
        %s235 = smul.addr %s234, 8
        %s236 = scalar_lea.vmem %s4, %s235
        %s237 = smul.u32 2, %s19
        %v239 = vld [vmem:[%s200] sm:$0xff]
        %v240 = vld [vmem:[%s200 + $0x8] sm:$0xff]
        %v241 = vld [vmem:[%s200 + $0x10] sm:$0xff]
        %v242 = vld [vmem:[%s200 + $0x18] sm:$0xff]
        %v243 = vld [vmem:[%s200 + $0x20] sm:$0xff]
        %v244 = vld [vmem:[%s200 + $0x28] sm:$0xff]
        %v245 = vld [vmem:[%s200 + $0x30] sm:$0xff]
        %v246 = vld [vmem:[%s200 + $0x38] sm:$0xff]
        %v247 = vpack.c.bf16 %v240, %v239
        %v248 = vpack.c.bf16 %v242, %v241
        %v249 = vpack.c.bf16 %v244, %v243
        %v250 = vpack.c.bf16 %v246, %v245
        %vm251 = vsmask.f32 1280
        %v253 = vshrl.u32 %v247, 16
        %v255 = vrot.slane %v253, 6
        %v256 = vshll.u32 %v247, 16
        %v258 = vrot.slane %v256, 7
        %v259 = vor.u32 %v255, %v258
        %v261 = vshrl.u32 %v248, 16
        %v263 = vrot.slane %v261, 6
        %v264 = vshll.u32 %v248, 16
        %v266 = vrot.slane %v264, 7
        %v267 = vor.u32 %v263, %v266
        %v268 = vsel %vm251, %v259, %v267
        %v270 = vshrl.u32 %v249, 16
        %v272 = vrot.slane %v270, 6
        %v273 = vshll.u32 %v249, 16
        %v275 = vrot.slane %v273, 7
        %v276 = vor.u32 %v272, %v275
        %v278 = vshrl.u32 %v250, 16
        %v280 = vrot.slane %v278, 6
        %v281 = vshll.u32 %v250, 16
        %v283 = vrot.slane %v281, 7
        %v284 = vor.u32 %v280, %v283
        %v285 = vsel %vm251, %v276, %v284
        %vm292 = vcmask 1047553
        %vm293 = vsmask.f32 7942
        %vm294 = vmand %vm292, %vm293
        %v295 = vld [vmem:[#allocation2] sm:$0xfe]
        %v296 = vsel %vm294, %v259, %v295
        %297 = vst [vmem:[#allocation2] sm:$0xfe] %v296
        %298 = vst [vmem:[#allocation2 + $0x18] sm:$0xff] %v268
        %vm299 = vcmask 1041408
        %vm300 = vmand %vm299, %vm251
        %v301 = vld [vmem:[#allocation2 + $0x30] sm:$0x3]
        %v302 = vsel %vm300, %v267, %v301
        %303 = vst [vmem:[#allocation2 + $0x30] sm:$0x3] %v302
        %v304 = vld [vmem:[#allocation2 + $0x48] sm:$0xfe]
        %v305 = vsel %vm294, %v276, %v304
        %306 = vst [vmem:[#allocation2 + $0x48] sm:$0xfe] %v305
        %307 = vst [vmem:[#allocation2 + $0x60] sm:$0xff] %v285
        %v308 = vld [vmem:[#allocation2 + $0x78] sm:$0x3]
        %v309 = vsel %vm300, %v284, %v308
        %310 = vst [vmem:[#allocation2 + $0x78] sm:$0x3] %v309
        %vm311 = vsmask.f32 1282
        %vm312 = vmand %vm299, %vm311
        %v313 = vld [vmem:[#allocation2] sm:$0x3]
        %v314 = vsel %vm312, %v267, %v313
        %315 = vst [vmem:[#allocation2] sm:$0x3] %v314
        %v316 = vld [vmem:[#allocation2 + $0x48] sm:$0x3]
        %v317 = vsel %vm312, %v284, %v316
        %318 = vst [vmem:[#allocation2 + $0x48] sm:$0x3] %v317
        %vm323 = vcmask 1040384
        %v324 = vrot.slane %v247, 7
        %v325 = vrot.slane %v248, 7
        %v326 = vsel %vm323, %v324, %v325
        %v327 = vrot.slane %v249, 7
        %v328 = vrot.slane %v250, 7
        %v329 = vsel %vm323, %v327, %v328
        %336 = vst [vmem:[#allocation2 + $0x8] sm:$0xfe] %v324
        %337 = vst [vmem:[#allocation2 + $0x20] sm:$0xff] %v326
        %338 = vst [vmem:[#allocation2 + $0x38] sm:$0x1] %v325
        %339 = vst [vmem:[#allocation2 + $0x50] sm:$0xfe] %v327
        %340 = vst [vmem:[#allocation2 + $0x68] sm:$0xff] %v329
        %341 = vst [vmem:[#allocation2 + $0x80] sm:$0x1] %v328
        %vm342 = vsmask.f32 7938
        %vm343 = vmand %vm323, %vm342
        %v344 = vld [vmem:[#allocation2 + $0x8] sm:$0x1]
        %v345 = vsel %vm343, %v325, %v344
        %346 = vst [vmem:[#allocation2 + $0x8] sm:$0x1] %v345
        %v347 = vld [vmem:[#allocation2 + $0x50] sm:$0x1]
        %v348 = vsel %vm343, %v328, %v347
        %349 = vst [vmem:[#allocation2 + $0x50] sm:$0x1] %v348
        %vm350 = vcmask 1041409
        %vm351 = vmand %vm350, %vm251
        %v352 = vld [vmem:[#allocation2 + $0x38] sm:$0x2]
        %v353 = vsel %vm351, %v324, %v352
        %354 = vst [vmem:[#allocation2 + $0x38] sm:$0x2] %v353
        %v355 = vld [vmem:[#allocation2 + $0x80] sm:$0x2]
        %v356 = vsel %vm351, %v327, %v355
        %357 = vst [vmem:[#allocation2 + $0x80] sm:$0x2] %v356
        %vm358 = vsmask.f32 256
        %v359 = vrot.slane %v253, 7
        %v360 = vor.u32 %v359, %v256
        %v361 = vrot.slane %v261, 7
        %v362 = vor.u32 %v361, %v264
        %v363 = vsel %vm358, %v359, %v362
        %v364 = vrot.slane %v270, 7
        %v365 = vor.u32 %v364, %v273
        %v366 = vrot.slane %v278, 7
        %v367 = vor.u32 %v366, %v281
        %v368 = vsel %vm358, %v364, %v367
        %vm375 = vcmask 1047552
        %vm376 = vmand %vm375, %vm342
        %v377 = vld [vmem:[#allocation2 + $0x10] sm:$0xff]
        %v378 = vsel %vm376, %v360, %v377
        %379 = vst [vmem:[#allocation2 + $0x10] sm:$0xff] %v378
        %380 = vst [vmem:[#allocation2 + $0x28] sm:$0xff] %v363
        %vm381 = vmand %vm323, %vm358
        %v382 = vld [vmem:[#allocation2 + $0x40] sm:$0x1]
        %v383 = vsel %vm381, %v361, %v382
        %384 = vst [vmem:[#allocation2 + $0x40] sm:$0x1] %v383
        %v385 = vld [vmem:[#allocation2 + $0x58] sm:$0xff]
        %v386 = vsel %vm376, %v365, %v385
        %387 = vst [vmem:[#allocation2 + $0x58] sm:$0xff] %v386
        %388 = vst [vmem:[#allocation2 + $0x70] sm:$0xff] %v368
        %v389 = vld [vmem:[#allocation2 + $0x88] sm:$0x1]
        %v390 = vsel %vm381, %v366, %v389
        %391 = vst [vmem:[#allocation2 + $0x88] sm:$0x1] %v390
        %v392 = vld [vmem:[#allocation2 + $0x40] sm:$0x3]
        %v393 = vsel %vm312, %v360, %v392
        %394 = vst [vmem:[#allocation2 + $0x40] sm:$0x3] %v393
        %v395 = vld [vmem:[#allocation2 + $0x88] sm:$0x3]
        %v396 = vsel %vm312, %v365, %v395
        %397 = vst [vmem:[#allocation2 + $0x88] sm:$0x3] %v396
        %v398 = vld [vmem:[#allocation2] sm:$0xff]
        %v399 = vld [vmem:[#allocation2 + $0x8] sm:$0xff]
        %v400 = vld [vmem:[#allocation2 + $0x10] sm:$0xff]
        %v401 = vld [vmem:[#allocation2 + $0x18] sm:$0xff]
        %v402 = vld [vmem:[#allocation2 + $0x20] sm:$0xff]
        %v403 = vld [vmem:[#allocation2 + $0x28] sm:$0xff]
        %v404 = vld [vmem:[#allocation2 + $0x30] sm:$0xff]
        %v405 = vld [vmem:[#allocation2 + $0x38] sm:$0xff]
        %v406 = vld [vmem:[#allocation2 + $0x40] sm:$0xff]
        %v407 = vld [vmem:[#allocation2 + $0x48] sm:$0xff]
        %v408 = vld [vmem:[#allocation2 + $0x50] sm:$0xff]
        %v409 = vld [vmem:[#allocation2 + $0x58] sm:$0xff]
        %v410 = vld [vmem:[#allocation2 + $0x60] sm:$0xff]
        %v411 = vld [vmem:[#allocation2 + $0x68] sm:$0xff]
        %v412 = vld [vmem:[#allocation2 + $0x70] sm:$0xff]
        %v413 = vld [vmem:[#allocation2 + $0x78] sm:$0xff]
        %v414 = vld [vmem:[#allocation2 + $0x80] sm:$0xff]
        %v415 = vld [vmem:[#allocation2 + $0x88] sm:$0xff]
        %v416 = vld [vmem:[#allocation6] sm:$0xf]
        %v417 = vld [vmem:[#allocation6 + $0x4] sm:$0xf]
        %v418 = vld [vmem:[#allocation6 + $0x8] sm:$0xf]
        %v419 = vld [vmem:[#allocation6 + $0xc] sm:$0xf]
        %v420 = vld [vmem:[#allocation6 + $0x10] sm:$0xf]
        %v421 = vld [vmem:[#allocation6 + $0x14] sm:$0xf]
        %v422 = vld [vmem:[#allocation6 + $0x18] sm:$0xf]
        %v423 = vld [vmem:[#allocation6 + $0x1c] sm:$0xf]
        %v424 = vld [vmem:[#allocation6 + $0x20] sm:$0xf]
        %v425 = vld [vmem:[#allocation6 + $0x24] sm:$0xf]
        %v426 = vld [vmem:[#allocation6 + $0x28] sm:$0xf]
        %v427 = vld [vmem:[#allocation6 + $0x2c] sm:$0xf]
        %v428 = vld [vmem:[#allocation6 + $0x30] sm:$0xf]
        %v429 = vld [vmem:[#allocation6 + $0x34] sm:$0xf]
        %v430 = vld [vmem:[#allocation6 + $0x38] sm:$0xf]
        %v431 = vld [vmem:[#allocation6 + $0x3c] sm:$0xf]
        %v432 = vld [vmem:[#allocation6 + $0x40] sm:$0xf]
        %v433 = vld [vmem:[#allocation6 + $0x44] sm:$0xf]
        %v434 = vld [vmem:[#allocation6 + $0x48] sm:$0xf]
        %v435 = vld [vmem:[#allocation6 + $0x4c] sm:$0xf]
        %v436 = vld [vmem:[#allocation6 + $0x50] sm:$0xf]
        %v437 = vld [vmem:[#allocation6 + $0x54] sm:$0xf]
        %v438 = vld [vmem:[#allocation6 + $0x58] sm:$0xf]
        %v439 = vld [vmem:[#allocation6 + $0x5c] sm:$0xf]
        %v440 = vld [vmem:[#allocation6 + $0x60] sm:$0xf]
        %v441 = vld [vmem:[#allocation6 + $0x64] sm:$0xf]
        %v442 = vld [vmem:[#allocation6 + $0x68] sm:$0xf]
        %v443 = vld [vmem:[#allocation6 + $0x6c] sm:$0xf]
        %v444 = vld [vmem:[#allocation6 + $0x70] sm:$0xf]
        %v445 = vld [vmem:[#allocation6 + $0x74] sm:$0xf]
        %v446 = vld [vmem:[#allocation6 + $0x78] sm:$0xf]
        %v447 = vld [vmem:[#allocation6 + $0x7c] sm:$0xf]
        %v448 = vld [vmem:[#allocation6 + $0x80] sm:$0xf]
        %v449 = vld [vmem:[#allocation6 + $0x84] sm:$0xf]
        %v450 = vld [vmem:[#allocation6 + $0x88] sm:$0xf]
        %v451 = vld [vmem:[#allocation6 + $0x8c] sm:$0xf]
        %v452 = vld [vmem:[#allocation6 + $0x90] sm:$0xf]
        %v453 = vld [vmem:[#allocation6 + $0x94] sm:$0xf]
        %v454 = vld [vmem:[#allocation6 + $0x98] sm:$0xf]
        %v455 = vld [vmem:[#allocation6 + $0x9c] sm:$0xf]
        %v456 = vld [vmem:[#allocation6 + $0xa0] sm:$0xf]
        %v457 = vld [vmem:[#allocation6 + $0xa4] sm:$0xf]
        %v458 = vld [vmem:[#allocation6 + $0xa8] sm:$0xf]
        %v459 = vld [vmem:[#allocation6 + $0xac] sm:$0xf]
        %v460 = vld [vmem:[#allocation6 + $0xb0] sm:$0xf]
        %v461 = vld [vmem:[#allocation6 + $0xb4] sm:$0xf]
        %v462 = vld [vmem:[#allocation6 + $0xb8] sm:$0xf]
        %v463 = vld [vmem:[#allocation6 + $0xbc] sm:$0xf]
        %v464 = vld [vmem:[%s2] sm:$0x1]
        %v466 = vlaneseq
        %v467 = vshrl.u32 %v466, 7
        %v468 = vsub.s32 0, %v467
        %v469 = vrot.slane %v464, %v468
        %v519 = vunpack.c.l.b16 %v416
        %v520 = vunpack.c.l.b16 %v417
        %v521 = vunpack.c.l.b16 %v418
        %v522 = vunpack.c.l.b16 %v419
        %v523 = vunpack.c.l.b16 %v420
        %v524 = vunpack.c.l.b16 %v421
        %v525 = vunpack.c.l.b16 %v422
        %v526 = vunpack.c.l.b16 %v423
        %v527 = vunpack.c.l.b16 %v424
        %v528 = vunpack.c.l.b16 %v425
        %v529 = vunpack.c.l.b16 %v426
        %v530 = vunpack.c.l.b16 %v427
        %v531 = vunpack.c.l.b16 %v428
        %v532 = vunpack.c.l.b16 %v429
        %v533 = vunpack.c.l.b16 %v430
        %v534 = vunpack.c.l.b16 %v431
        %v535 = vunpack.c.l.b16 %v432
        %v536 = vunpack.c.l.b16 %v433
        %v537 = vunpack.c.l.b16 %v434
        %v538 = vunpack.c.l.b16 %v435
        %v539 = vunpack.c.l.b16 %v436
        %v540 = vunpack.c.l.b16 %v437
        %v541 = vunpack.c.l.b16 %v438
        %v542 = vunpack.c.l.b16 %v439
        %v543 = vunpack.c.l.b16 %v440
        %v544 = vunpack.c.l.b16 %v441
        %v545 = vunpack.c.l.b16 %v442
        %v546 = vunpack.c.l.b16 %v443
        %v547 = vunpack.c.l.b16 %v444
        %v548 = vunpack.c.l.b16 %v445
        %v549 = vunpack.c.l.b16 %v446
        %v550 = vunpack.c.l.b16 %v447
        %v551 = vunpack.c.l.b16 %v448
        %v552 = vunpack.c.l.b16 %v449
        %v553 = vunpack.c.l.b16 %v450
        %v554 = vunpack.c.l.b16 %v451
        %v555 = vunpack.c.l.b16 %v452
        %v556 = vunpack.c.l.b16 %v453
        %v557 = vunpack.c.l.b16 %v454
        %v558 = vunpack.c.l.b16 %v455
        %v559 = vunpack.c.l.b16 %v456
        %v560 = vunpack.c.l.b16 %v457
        %v561 = vunpack.c.l.b16 %v458
        %v562 = vunpack.c.l.b16 %v459
        %v563 = vunpack.c.l.b16 %v460
        %v564 = vunpack.c.l.b16 %v461
        %v565 = vunpack.c.l.b16 %v462
        %v566 = vunpack.c.l.b16 %v463
        %v567 = vpack.c.b16 %v520, %v519
        %v568 = vpack.c.b16 %v522, %v521
        %v569 = vpack.c.b16 %v524, %v523
        %v570 = vpack.c.b16 %v526, %v525
        %v571 = vpack.c.b16 %v528, %v527
        %v572 = vpack.c.b16 %v530, %v529
        %v573 = vpack.c.b16 %v532, %v531
        %v574 = vpack.c.b16 %v534, %v533
        %v575 = vpack.c.b16 %v536, %v535
        %v576 = vpack.c.b16 %v538, %v537
        %v577 = vpack.c.b16 %v540, %v539
        %v578 = vpack.c.b16 %v542, %v541
        %v579 = vpack.c.b16 %v544, %v543
        %v580 = vpack.c.b16 %v546, %v545
        %v581 = vpack.c.b16 %v548, %v547
        %v582 = vpack.c.b16 %v550, %v549
        %v583 = vpack.c.b16 %v552, %v551
        %v584 = vpack.c.b16 %v554, %v553
        %v585 = vpack.c.b16 %v556, %v555
        %v586 = vpack.c.b16 %v558, %v557
        %v587 = vpack.c.b16 %v560, %v559
        %v588 = vpack.c.b16 %v562, %v561
        %v589 = vpack.c.b16 %v564, %v563
        %v590 = vpack.c.b16 %v566, %v565
        %615 = vmatprep.subr.bf16.mxu0 0
        %616 = vmatpush1.bf16.msra.mxu0 %v567
        %617 = vmatprep.subr.bf16.mxu0 0
        %618 = vmatpush1.bf16.msra.mxu0 %v568
        %619 = vmatprep.subr.bf16.mxu0 0
        %620 = vmatpush1.bf16.msra.mxu0 %v569
        %621 = vmatprep.subr.bf16.mxu0 0
        %622 = vmatpush1.bf16.msra.mxu0 %v570
        %623 = vmatprep.subr.bf16.mxu0 0
        %624 = vmatpush1.bf16.msra.mxu0 %v571
        %625 = vmatprep.subr.bf16.mxu0 0
        %626 = vmatpush1.bf16.msra.mxu0 %v572
        %627 = vmatprep.subr.bf16.mxu0 0
        %628 = vmatpush1.bf16.msra.mxu0 %v573
        %629 = vmatprep.subr.bf16.mxu0 0
        %630 = vmatpush1.bf16.msra.mxu0 %v574
        %631 = vmatprep.subr.bf16.mxu0 0
        %632 = vmatpush1.bf16.msra.mxu0 %v575
        %633 = vmatprep.subr.bf16.mxu0 0
        %634 = vmatpush1.bf16.msra.mxu0 %v576
        %635 = vmatprep.subr.bf16.mxu0 0
        %636 = vmatpush1.bf16.msra.mxu0 %v577
        %637 = vmatprep.subr.bf16.mxu0 0
        %638 = vmatpush1.bf16.msra.mxu0 %v578
        %639 = vmatprep.subr.bf16.mxu0 0
        %640 = vmatpush1.bf16.msra.mxu0 %v579
        %641 = vmatprep.subr.bf16.mxu0 0
        %642 = vmatpush1.bf16.msra.mxu0 %v580
        %643 = vmatprep.subr.bf16.mxu0 0
        %644 = vmatpush1.bf16.msra.mxu0 %v581
        %645 = vmatprep.subr.bf16.mxu0 0
        %646 = vmatpush1.bf16.msra.mxu0 %v582
        %647 = vmatprep.mubr.bf16.mxu0 %v399
        %648 = vmatmul.mubr.bf16.gmra.mrb[0].mxu0 %v398
        %v649 = vpop.f32.mrb[0].mxu0
        %v650 = vadd.f32 %v469, %v649
        %v651 = vpop.f32.mrb[0].mxu0
        %v652 = vpop.f32.mrb[0].mxu0
        %v653 = vadd.f32 %v469, %v652
        %v654 = vpop.f32.mrb[0].mxu0
        %655 = vmatprep.mubr.bf16.mxu0 %v402
        %656 = vmatmul.mubr.bf16.gmra.mrb[0].mxu0 %v401
        %v657 = vpop.f32.mrb[0].mxu0
        %v658 = vadd.f32 %v469, %v657
        %v659 = vpop.f32.mrb[0].mxu0
        %v660 = vpop.f32.mrb[0].mxu0
        %v661 = vadd.f32 %v469, %v660
        %v662 = vpop.f32.mrb[0].mxu0
        %663 = vmatprep.mubr.bf16.mxu0 %v405
        %664 = vmatmul.mubr.bf16.gmra.mrb[0].mxu0 %v404
        %v665 = vpop.f32.mrb[0].mxu0
        %v666 = vadd.f32 %v469, %v665
        %v667 = vpop.f32.mrb[0].mxu0
        %v668 = vpop.f32.mrb[0].mxu0
        %v669 = vadd.f32 %v469, %v668
        %v670 = vpop.f32.mrb[0].mxu0
        %671 = vmatprep.mubr.bf16.mxu0 %v408
        %672 = vmatmul.mubr.bf16.gmra.mrb[0].mxu0 %v407
        %v673 = vpop.f32.mrb[0].mxu0
        %v674 = vadd.f32 %v469, %v673
        %v675 = vpop.f32.mrb[0].mxu0
        %v676 = vpop.f32.mrb[0].mxu0
        %v677 = vadd.f32 %v469, %v676
        %v678 = vpop.f32.mrb[0].mxu0
        %679 = vmatprep.mubr.bf16.mxu0 %v411
        %680 = vmatmul.mubr.bf16.gmra.mrb[0].mxu0 %v410
        %v681 = vpop.f32.mrb[0].mxu0
        %v682 = vadd.f32 %v469, %v681
        %v683 = vpop.f32.mrb[0].mxu0
        %v684 = vpop.f32.mrb[0].mxu0
        %v685 = vadd.f32 %v469, %v684
        %v686 = vpop.f32.mrb[0].mxu0
        %687 = vmatprep.mubr.bf16.mxu0 %v414
        %688 = vmatmul.mubr.bf16.gmra.mrb[0].mxu0 %v413
        %v689 = vpop.f32.mrb[0].mxu0
        %v690 = vadd.f32 %v469, %v689
        %v691 = vpop.f32.mrb[0].mxu0
        %v692 = vpop.f32.mrb[0].mxu0
        %v693 = vadd.f32 %v469, %v692
        %v694 = vpop.f32.mrb[0].mxu0
        %695 = vdwg.mxu0
        %696 = vmatprep.subr.bf16.mxu0 0
        %697 = vmatpush1.bf16.msra.mxu0 %v583
        %698 = vmatprep.subr.bf16.mxu0 0
        %699 = vmatpush1.bf16.msra.mxu0 %v584
        %700 = vmatprep.subr.bf16.mxu0 0
        %701 = vmatpush1.bf16.msra.mxu0 %v585
        %702 = vmatprep.subr.bf16.mxu0 0
        %703 = vmatpush1.bf16.msra.mxu0 %v586
        %704 = vmatprep.subr.bf16.mxu0 0
        %705 = vmatpush1.bf16.msra.mxu0 %v587
        %706 = vmatprep.subr.bf16.mxu0 0
        %707 = vmatpush1.bf16.msra.mxu0 %v588
        %708 = vmatprep.subr.bf16.mxu0 0
        %709 = vmatpush1.bf16.msra.mxu0 %v589
        %710 = vmatprep.subr.bf16.mxu0 0
        %711 = vmatpush1.bf16.msra.mxu0 %v590
        %712 = vmatprep.subr.bf16.mxu0 0
        %713 = vmatpush1.bf16.msra.mxu0 0
        %714 = vmatprep.subr.bf16.mxu0 0
        %715 = vmatpush1.bf16.msra.mxu0 0
        %716 = vmatprep.subr.bf16.mxu0 0
        %717 = vmatpush1.bf16.msra.mxu0 0
        %718 = vmatprep.subr.bf16.mxu0 0
        %719 = vmatpush1.bf16.msra.mxu0 0
        %720 = vmatprep.subr.bf16.mxu0 0
        %721 = vmatpush1.bf16.msra.mxu0 0
        %722 = vmatprep.subr.bf16.mxu0 0
        %723 = vmatpush1.bf16.msra.mxu0 0
        %724 = vmatprep.subr.bf16.mxu0 0
        %725 = vmatpush1.bf16.msra.mxu0 0
        %726 = vmatprep.subr.bf16.mxu0 0
        %727 = vmatpush1.bf16.msra.mxu0 0
        %728 = vmatprep.mubr.bf16.mxu0 0
        %729 = vmatmul.mubr.bf16.gmra.mrb[0].mxu0 %v400
        %v730 = vpop.f32.mrb[0].mxu0
        %v731 = vadd.f32 %v650, %v730
        %v732 = vpop.f32.mrb[0].mxu0
        %v733 = vpop.f32.mrb[0].mxu0
        %v734 = vadd.f32 %v653, %v733
        %v735 = vpop.f32.mrb[0].mxu0
        %736 = vmatprep.mubr.bf16.mxu0 0
        %737 = vmatmul.mubr.bf16.gmra.mrb[0].mxu0 %v403
        %v738 = vpop.f32.mrb[0].mxu0
        %v739 = vadd.f32 %v658, %v738
        %v740 = vpop.f32.mrb[0].mxu0
        %v741 = vpop.f32.mrb[0].mxu0
        %v742 = vadd.f32 %v661, %v741
        %v743 = vpop.f32.mrb[0].mxu0
        %744 = vmatprep.mubr.bf16.mxu0 0
        %745 = vmatmul.mubr.bf16.gmra.mrb[0].mxu0 %v406
        %v746 = vpop.f32.mrb[0].mxu0
        %v747 = vadd.f32 %v666, %v746
        %v748 = vpop.f32.mrb[0].mxu0
        %v749 = vpop.f32.mrb[0].mxu0
        %v750 = vadd.f32 %v669, %v749
        %v751 = vpop.f32.mrb[0].mxu0
        %752 = vmatprep.mubr.bf16.mxu0 0
        %753 = vmatmul.mubr.bf16.gmra.mrb[0].mxu0 %v409
        %v754 = vpop.f32.mrb[0].mxu0
        %v755 = vadd.f32 %v674, %v754
        %v756 = vpop.f32.mrb[0].mxu0
        %v757 = vpop.f32.mrb[0].mxu0
        %v758 = vadd.f32 %v677, %v757
        %v759 = vpop.f32.mrb[0].mxu0
        %760 = vmatprep.mubr.bf16.mxu0 0
        %761 = vmatmul.mubr.bf16.gmra.mrb[0].mxu0 %v412
        %v762 = vpop.f32.mrb[0].mxu0
        %v763 = vadd.f32 %v682, %v762
        %v764 = vpop.f32.mrb[0].mxu0
        %v765 = vpop.f32.mrb[0].mxu0
        %v766 = vadd.f32 %v685, %v765
        %v767 = vpop.f32.mrb[0].mxu0
        %768 = vmatprep.mubr.bf16.mxu0 0
        %769 = vmatmul.mubr.bf16.gmra.mrb[0].mxu0 %v415
        %v770 = vpop.f32.mrb[0].mxu0
        %v771 = vadd.f32 %v690, %v770
        %v772 = vpop.f32.mrb[0].mxu0
        %v773 = vpop.f32.mrb[0].mxu0
        %v774 = vadd.f32 %v693, %v773
        %v775 = vpop.f32.mrb[0].mxu0
        %776 = vdwg.mxu0
        %vm777 = vcmp.gt.f32.partialorder %v731, 0.0
        %vm778 = vcmp.gt.f32.partialorder %v734, 0.0
        %vm779 = vcmp.gt.f32.partialorder %v739, 0.0
        %vm780 = vcmp.gt.f32.partialorder %v742, 0.0
        %vm781 = vcmp.gt.f32.partialorder %v747, 0.0
        %vm782 = vcmp.gt.f32.partialorder %v750, 0.0
        %vm783 = vcmp.gt.f32.partialorder %v755, 0.0
        %vm784 = vcmp.gt.f32.partialorder %v758, 0.0
        %vm785 = vcmp.gt.f32.partialorder %v763, 0.0
        %vm786 = vcmp.gt.f32.partialorder %v766, 0.0
        %vm787 = vcmp.gt.f32.partialorder %v771, 0.0
        %vm788 = vcmp.gt.f32.partialorder %v774, 0.0
        %v789 = vmin.f32 %v731, 0.0
        %v790 = vmin.f32 %v734, 0.0
        %v791 = vmin.f32 %v739, 0.0
        %v792 = vmin.f32 %v742, 0.0
        %v793 = vmin.f32 %v747, 0.0
        %v794 = vmin.f32 %v750, 0.0
        %v795 = vmin.f32 %v755, 0.0
        %v796 = vmin.f32 %v758, 0.0
        %v797 = vmin.f32 %v763, 0.0
        %v798 = vmin.f32 %v766, 0.0
        %v799 = vmin.f32 %v771, 0.0
        %v800 = vmin.f32 %v774, 0.0
        %v801 = vmul.f32 %v789, 1.442695
        %v802 = vpow.pop %v801
        %v803 = vmul.f32 %v790, 1.442695
        %v804 = vpow.pop %v803
        %v805 = vmul.f32 %v791, 1.442695
        %v806 = vpow.pop %v805
        %v807 = vmul.f32 %v792, 1.442695
        %v808 = vpow.pop %v807
        %v809 = vmul.f32 %v793, 1.442695
        %v810 = vpow.pop %v809
        %v811 = vmul.f32 %v794, 1.442695
        %v812 = vpow.pop %v811
        %v813 = vmul.f32 %v795, 1.442695
        %v814 = vpow.pop %v813
        %v815 = vmul.f32 %v796, 1.442695
        %v816 = vpow.pop %v815
        %v817 = vmul.f32 %v797, 1.442695
        %v818 = vpow.pop %v817
        %v819 = vmul.f32 %v798, 1.442695
        %v820 = vpow.pop %v819
        %v821 = vmul.f32 %v799, 1.442695
        %v822 = vpow.pop %v821
        %v823 = vmul.f32 %v800, 1.442695
        %v824 = vpow.pop %v823
        %v825 = vsub.f32 %v802, 1.0
        %v826 = vsub.f32 %v804, 1.0
        %v827 = vsub.f32 %v806, 1.0
        %v828 = vsub.f32 %v808, 1.0
        %v829 = vsub.f32 %v810, 1.0
        %v830 = vsub.f32 %v812, 1.0
        %v831 = vsub.f32 %v814, 1.0
        %v832 = vsub.f32 %v816, 1.0
        %v833 = vsub.f32 %v818, 1.0
        %v834 = vsub.f32 %v820, 1.0
        %v835 = vsub.f32 %v822, 1.0
        %v836 = vsub.f32 %v824, 1.0
        %v837 = vsel %vm777, %v731, %v825
        %v838 = vsel %vm778, %v734, %v826
        %v839 = vsel %vm779, %v739, %v827
        %v840 = vsel %vm780, %v742, %v828
        %v841 = vsel %vm781, %v747, %v829
        %v842 = vsel %vm782, %v750, %v830
        %v843 = vsel %vm783, %v755, %v831
        %v844 = vsel %vm784, %v758, %v832
        %v845 = vsel %vm785, %v763, %v833
        %v846 = vsel %vm786, %v766, %v834
        %v847 = vsel %vm787, %v771, %v835
        %v848 = vsel %vm788, %v774, %v836
        %v849 = vld [vmem:[%s3] sm:$0xff]
        %v850 = vld [vmem:[%s3 + $0x8] sm:$0xff]
        %v851 = vld [vmem:[%s3 + $0x10] sm:$0xff]
        %v852 = vld [vmem:[%s3 + $0x18] sm:$0xff]
        %v853 = vld [vmem:[%s3 + $0x20] sm:$0xff]
        %v854 = vld [vmem:[%s3 + $0x28] sm:$0xff]
        %v855 = vld [vmem:[%s3 + $0x30] sm:$0xff]
        %v856 = vld [vmem:[%s3 + $0x38] sm:$0xff]
        %v857 = vld [vmem:[%s3 + $0x40] sm:$0xff]
        %v858 = vld [vmem:[%s3 + $0x48] sm:$0xff]
        %v859 = vld [vmem:[%s3 + $0x50] sm:$0xff]
        %v860 = vld [vmem:[%s3 + $0x58] sm:$0xff]
        %vm861 = vcmp.gt.f32.partialorder %v849, 0.5
        %vm862 = vcmp.gt.f32.partialorder %v850, 0.5
        %vm863 = vcmp.gt.f32.partialorder %v851, 0.5
        %vm864 = vcmp.gt.f32.partialorder %v852, 0.5
        %vm865 = vcmp.gt.f32.partialorder %v853, 0.5
        %vm866 = vcmp.gt.f32.partialorder %v854, 0.5
        %vm867 = vcmp.gt.f32.partialorder %v855, 0.5
        %vm868 = vcmp.gt.f32.partialorder %v856, 0.5
        %vm869 = vcmp.gt.f32.partialorder %v857, 0.5
        %vm870 = vcmp.gt.f32.partialorder %v858, 0.5
        %vm871 = vcmp.gt.f32.partialorder %v859, 0.5
        %vm872 = vcmp.gt.f32.partialorder %v860, 0.5
        %v873 = vsel %vm861, 1, 0
        %v874 = vsel %vm862, 1, 0
        %v875 = vsel %vm863, 1, 0
        %v876 = vsel %vm864, 1, 0
        %v877 = vsel %vm865, 1, 0
        %v878 = vsel %vm866, 1, 0
        %v879 = vsel %vm867, 1, 0
        %v880 = vsel %vm868, 1, 0
        %v881 = vsel %vm869, 1, 0
        %v882 = vsel %vm870, 1, 0
        %v883 = vsel %vm871, 1, 0
        %v884 = vsel %vm872, 1, 0
        %885 = vset.pattern.permute.xlu0 0
        %886 = vperm.xlu0 %885, %v873
        %v887 = vpop.permute.xlu0 %886
        %888 = vset.pattern.permute.xlu0 0
        %889 = vperm.xlu0 %888, %v874
        %v890 = vpop.permute.xlu0 %889
        %891 = vset.pattern.permute.xlu0 0
        %892 = vperm.xlu0 %891, %v875
        %v893 = vpop.permute.xlu0 %892
        %894 = vset.pattern.permute.xlu0 0
        %895 = vperm.xlu0 %894, %v876
        %v896 = vpop.permute.xlu0 %895
        %897 = vset.pattern.permute.xlu0 0
        %898 = vperm.xlu0 %897, %v877
        %v899 = vpop.permute.xlu0 %898
        %900 = vset.pattern.permute.xlu0 0
        %901 = vperm.xlu0 %900, %v878
        %v902 = vpop.permute.xlu0 %901
        %903 = vset.pattern.permute.xlu0 0
        %904 = vperm.xlu0 %903, %v879
        %v905 = vpop.permute.xlu0 %904
        %906 = vset.pattern.permute.xlu0 0
        %907 = vperm.xlu0 %906, %v880
        %v908 = vpop.permute.xlu0 %907
        %909 = vset.pattern.permute.xlu0 0
        %910 = vperm.xlu0 %909, %v881
        %v911 = vpop.permute.xlu0 %910
        %912 = vset.pattern.permute.xlu0 0
        %913 = vperm.xlu0 %912, %v882
        %v914 = vpop.permute.xlu0 %913
        %915 = vset.pattern.permute.xlu0 0
        %916 = vperm.xlu0 %915, %v883
        %v917 = vpop.permute.xlu0 %916
        %918 = vset.pattern.permute.xlu0 0
        %919 = vperm.xlu0 %918, %v884
        %v920 = vpop.permute.xlu0 %919
        %vm921 = vcmp.eq.s32.totalorder %v887, 1
        %vm922 = vcmp.eq.s32.totalorder %v890, 1
        %vm923 = vcmp.eq.s32.totalorder %v893, 1
        %vm924 = vcmp.eq.s32.totalorder %v896, 1
        %vm925 = vcmp.eq.s32.totalorder %v899, 1
        %vm926 = vcmp.eq.s32.totalorder %v902, 1
        %vm927 = vcmp.eq.s32.totalorder %v905, 1
        %vm928 = vcmp.eq.s32.totalorder %v908, 1
        %vm929 = vcmp.eq.s32.totalorder %v911, 1
        %vm930 = vcmp.eq.s32.totalorder %v914, 1
        %vm931 = vcmp.eq.s32.totalorder %v917, 1
        %vm932 = vcmp.eq.s32.totalorder %v920, 1
        %v933 = vsel %vm921, -1e+30, %v837
        %v934 = vsel %vm922, -1e+30, %v838
        %v935 = vsel %vm923, -1e+30, %v839
        %v936 = vsel %vm924, -1e+30, %v840
        %v937 = vsel %vm925, -1e+30, %v841
        %v938 = vsel %vm926, -1e+30, %v842
        %v939 = vsel %vm927, -1e+30, %v843
        %v940 = vsel %vm928, -1e+30, %v844
        %v941 = vsel %vm929, -1e+30, %v845
        %v942 = vsel %vm930, -1e+30, %v846
        %v943 = vsel %vm931, -1e+30, %v847
        %v944 = vsel %vm932, -1e+30, %v848
        %945 = vst [vmem:[#allocation3] sm:$0xff] %v933
        %946 = vst [vmem:[#allocation3 + $0x8] sm:$0xff] %v934
        %947 = vst [vmem:[#allocation3 + $0x10] sm:$0xff] %v935
        %948 = vst [vmem:[#allocation3 + $0x18] sm:$0xff] %v936
        %949 = vst [vmem:[#allocation3 + $0x20] sm:$0xff] %v937
        %950 = vst [vmem:[#allocation3 + $0x28] sm:$0xff] %v938
        %951 = vst [vmem:[#allocation3 + $0x30] sm:$0xff] %v939
        %952 = vst [vmem:[#allocation3 + $0x38] sm:$0xff] %v940
        %953 = vst [vmem:[#allocation3 + $0x40] sm:$0xff] %v941
        %954 = vst [vmem:[#allocation3 + $0x48] sm:$0xff] %v942
        %955 = vst [vmem:[#allocation3 + $0x50] sm:$0xff] %v943
        %956 = vst [vmem:[#allocation3 + $0x58] sm:$0xff] %v944
        %v957 = vld [vmem:[#allocation3] ss:$2 sm:$0xff]
        %s958 = scalar_lea.vmem [#allocation3], 16
        %v959 = vld [vmem:[%s958] ss:$2 sm:$0xff]
        %s960 = scalar_lea.vmem [#allocation3], 32
        %v961 = vld [vmem:[%s960] ss:$2 sm:$0xff]
        %s962 = scalar_lea.vmem [#allocation3], 48
        %v963 = vld [vmem:[%s962] ss:$2 sm:$0xff]
        %s964 = scalar_lea.vmem [#allocation3], 64
        %v965 = vld [vmem:[%s964] ss:$2 sm:$0xff]
        %s966 = scalar_lea.vmem [#allocation3], 80
        %v967 = vld [vmem:[%s966] ss:$2 sm:$0xff]
        %s968 = scalar_lea.vmem [#allocation3], 1
        %v969 = vld [vmem:[%s968] ss:$2 sm:$0xff]
        %s970 = scalar_lea.vmem [#allocation3], 17
        %v971 = vld [vmem:[%s970] ss:$2 sm:$0xff]
        %s972 = scalar_lea.vmem [#allocation3], 33
        %v973 = vld [vmem:[%s972] ss:$2 sm:$0xff]
        %s974 = scalar_lea.vmem [#allocation3], 49
        %v975 = vld [vmem:[%s974] ss:$2 sm:$0xff]
        %s976 = scalar_lea.vmem [#allocation3], 65
        %v977 = vld [vmem:[%s976] ss:$2 sm:$0xff]
        %s978 = scalar_lea.vmem [#allocation3], 81
        %v979 = vld [vmem:[%s978] ss:$2 sm:$0xff]
        %s980 = scalar_lea.vmem [#allocation3], 2
        %v981 = vld [vmem:[%s980] ss:$2 sm:$0xff]
        %s982 = scalar_lea.vmem [#allocation3], 18
        %v983 = vld [vmem:[%s982] ss:$2 sm:$0xff]
        %s984 = scalar_lea.vmem [#allocation3], 34
        %v985 = vld [vmem:[%s984] ss:$2 sm:$0xff]
        %s986 = scalar_lea.vmem [#allocation3], 50
        %v987 = vld [vmem:[%s986] ss:$2 sm:$0xff]
        %s988 = scalar_lea.vmem [#allocation3], 66
        %v989 = vld [vmem:[%s988] ss:$2 sm:$0xff]
        %s990 = scalar_lea.vmem [#allocation3], 82
        %v991 = vld [vmem:[%s990] ss:$2 sm:$0xff]
        %v992 = vmax.f32 %v957, %v969
        %v993 = vmax.f32 %v959, %v971
        %v994 = vmax.f32 %v961, %v973
        %v995 = vmax.f32 %v963, %v975
        %v996 = vmax.f32 %v965, %v977
        %v997 = vmax.f32 %v967, %v979
        %v998 = vmax.f32 %v992, %v981
        %v999 = vmax.f32 %v993, %v983
        %v1000 = vmax.f32 %v994, %v985
        %v1001 = vmax.f32 %v995, %v987
        %v1002 = vmax.f32 %v996, %v989
        %v1003 = vmax.f32 %v997, %v991
        %1004 = vst [vmem:[%s236] sm:$0xff] %v998
        %1005 = vst [vmem:[%s236 + $0x8] sm:$0xff] %v999
        %1006 = vst [vmem:[%s236 + $0x10] sm:$0x1] %v1000
        %1007 = vst [vmem:[%s236 + $0x18] sm:$0xff] %v1001
        %1008 = vst [vmem:[%s236 + $0x20] sm:$0xff] %v1002
        %1009 = vst [vmem:[%s236 + $0x28] sm:$0x1] %v1003
        %s1010 = smul.u32 2, %s19
        %p1011 = scmp.lt.s32.totalorder %s1010, 3
        %s1012 = scalar_select %p1011, %s1010, 3
        %s1013 = smul.addr %s1012, 3
        %s1014 = smul.addr %s1013, 8
        %s1015 = scalar_lea.vmem %s4, %s1014
        // Predicated region
        $region45: #{tpu_custom_call.1} parent=35 // pred_check
          %p1016 = pneg %p126
        $region46: #{tpu_custom_call.1} parent=35 // pred_check_branch
          %1018 = sbr.rel (%p1016) target = $region48
        $region47: #{tpu_custom_call.1} parent=35 // pred_region
          %s1019 = smul.u32 2, %s19
        $region48: #{tpu_custom_call.1} parent=35 // pred_fallthru
          _
      $region36: #{tpu_custom_call.1} parent=5 // pred_fallthru
        _
      %p1020 = scmp.le.s32.totalorder 2, %s14
      // Predicated region
      $region49: #{tpu_custom_call.1} parent=5 // pred_check
        %p1021 = pneg %p1020
      $region50: #{tpu_custom_call.1} parent=5 // pred_check_branch
        %1023 = sbr.rel (%p1021) target = $region52
      $region51: #{tpu_custom_call.1} parent=5 // pred_region
        %s1024 = ssub.s32 %s14, 2
        // Predicated region
        $region53: #{tpu_custom_call.1} parent=51 // pred_check
          %p1025 = pneg %p132
        $region54: #{tpu_custom_call.1} parent=51 // pred_check_branch
          %1027 = sbr.rel (%p1025) target = $region56
        $region55: #{tpu_custom_call.1} parent=51 // pred_region
          %s1028 = smul.u32 2, %s20
          %p1029 = scmp.lt.s32.totalorder %s1028, 3
          %s1030 = scalar_select %p1029, %s1028, 3
          %s1031 = smul.addr %s1030, 3
          %s1032 = smul.addr %s1031, 8
          %s1033 = scalar_lea.vmem %s4, %s1032
        $region56: #{tpu_custom_call.1} parent=51 // pred_fallthru
          _
      $region52: #{tpu_custom_call.1} parent=5 // pred_fallthru
        _
    $region6: #{tpu_custom_call.1} parent=1 // loop_footer
      %s18 = sadd.s32 1, %s14
    $region7: #{tpu_custom_call.1} parent=1 // loop_footer_branch
      %13 = sbr.rel target = $region3
    $region8: #{tpu_custom_call.1} parent=1 // loop_exit
      _
    %1034 = vsyncpa [#allocation5], 1
    %s1035 = scalar_lea.sflag [#allocation5], 1
    %1036 = vsyncpa %s1035, 1
    %1037 = vsyncpa [#allocation7], 1

</llo_original>
